<compile_context>
chip_gen: v5e
topology: v5e:2x2
jax: 0.10.0
libtpu: 0.0.40
codegen_flags: <defaults>
</compile_context>

<pallas_src>
import functools

import jax
import jax.numpy as jnp
from jax.experimental import pallas as pl
from jax.experimental.pallas import tpu as pltpu


def _cls_film_kernel(x_ref, gb_ref, wn_ref, o_ref, *,
                     agg_method: str, num_nodes: int, block_batch: int):
    """One grid step = block_batch graphs.

    x_ref  : (bt*N, Dn)      VMEM  node features (flattened in the wrapper)
    gb_ref : (bt, 2*Do_pad)  VMEM  [gamma | beta']  (beta' has b_node folded in)
    wn_ref : (Dn, Do_pad)    VMEM  node weight (resident across grid steps)
    o_ref  : (bt, Do_pad)    VMEM  aggregated output (lane-dense)
    """
    bt, n = block_batch, num_nodes
    do = o_ref.shape[-1]

    # One MXU matmul covering all bt graphs in this block, f32 accumulation.
    h = jnp.dot(x_ref[...], wn_ref[...], preferred_element_type=jnp.float32)
    h = h.reshape(bt, n, do)                       # layout no-op when N % 8 == 0

    # FiLM modulation + ReLU (VPU).  b_node is already folded into beta'.
    gamma = gb_ref[:, :do][:, None, :]             # (bt, 1, Do_pad)
    beta = gb_ref[:, do:][:, None, :]              # (bt, 1, Do_pad)
    mod = jnp.maximum(gamma * h + beta, 0.0)       # (bt, N, Do_pad)

    # Graph readout: reduce over the node (sublane) axis, keep Do on lanes.
    if agg_method == "mean":
        agg = jnp.sum(mod, axis=1) * (1.0 / n)
    elif agg_method == "sum":
        agg = jnp.sum(mod, axis=1)
    elif agg_method == "max":
        agg = jnp.max(mod, axis=1)
    else:
        raise NotImplementedError(agg_method)

    o_ref[...] = agg.astype(o_ref.dtype)           # dense, unmasked (bt, Do_pad) store


def _choose_block_batch(B, N, Dn, do_pad, x_itemsize, *,
                        vmem_budget_bytes, min_grid=4):
    """Largest bt (multiple of 8, dividing B) whose working set fits the VMEM
    budget, preferring >= min_grid grid steps (2 per TC on v7x) when B allows."""
    def vmem_bytes(bt):
        x_blk = bt * N * Dn * x_itemsize           # x input block
        gb_blk = bt * 2 * do_pad * 4               # gamma|beta block (f32)
        o_blk = bt * do_pad * 4                    # output block (f32)
        h_blk = bt * N * do_pad * 4                # f32 h / mod intermediate
        w_blk = Dn * do_pad * x_itemsize           # resident node weight
        return 2 * (x_blk + gb_blk + o_blk) + h_blk + w_blk  # 2x = double buffer

    cands = [bt for bt in range(8, B + 1, 8) if B % bt == 0] or [B]
    fitting = [bt for bt in cands if vmem_bytes(bt) <= vmem_budget_bytes] or [min(cands)]
    deep = [bt for bt in fitting if B // bt >= min_grid]
    return max(deep or fitting)


def cls_graph_layer(x, cond, params, *, method: str = "film_mean",
                    block_batch=None, vmem_limit_bytes=48 << 20):
    """Pallas implementation of ClsGraphLayer.forward.

    x      : (B, N, node_dim)  node features (f32 or bf16 — used as-is; provide
                               bf16 from the producer to halve x HBM traffic)
    cond   : (B, cond_dim)     f32 condition vector
    params : dict of weights (see init_params)
    returns: (B, out_dim) float32
    """
    c_type, agg_method = method.split("_")
    if c_type != "film":
        raise NotImplementedError(method)

    B, N, Dn = x.shape
    Do = params["w_node"].shape[-1]
    do_pad = 128 * pl.cdiv(Do, 128)                # lane-dense output width

    # Hoist the tiny FiLM projections to batched XLA matmuls; fold b_node:
    #   gamma*(x@W + b_node) + beta == gamma*(x@W) + (gamma*b_node + beta)
    gamma = (cond @ params["w_gamma"] + params["b_gamma"]).astype(jnp.float32)
    beta = (gamma * params["b_node"]
            + cond @ params["w_beta"] + params["b_beta"]).astype(jnp.float32)

    w_node = params["w_node"].astype(x.dtype)      # match MXU operand dtype to x
    if do_pad != Do:                               # zero-pad columns -> lane-dense
        pad = do_pad - Do
        gamma = jnp.pad(gamma, ((0, 0), (0, pad)))
        beta = jnp.pad(beta, ((0, 0), (0, pad)))
        w_node = jnp.pad(w_node, ((0, 0), (0, pad)))
    gb = jnp.concatenate([gamma, beta], axis=-1)   # (B, 2*do_pad), one DMA/step

    bt = block_batch if block_batch is not None else _choose_block_batch(
        B, N, Dn, do_pad, jnp.dtype(x.dtype).itemsize,
        vmem_budget_bytes=int(0.85 * vmem_limit_bytes))
    assert B % bt == 0, f"block_batch={bt} must divide batch={B} (no padding path)"
    grid_b = B // bt

    x2 = x.reshape(B * N, Dn)                      # free HBM-layout reshape

    kernel = functools.partial(_cls_film_kernel, agg_method=agg_method,
                               num_nodes=N, block_batch=bt)

    out = pl.pallas_call(
        kernel,
        out_shape=jax.ShapeDtypeStruct((B, do_pad), jnp.float32),
        grid_spec=pltpu.PrefetchScalarGridSpec(
            num_scalar_prefetch=0,
            grid=(grid_b,),
            in_specs=[
                pl.BlockSpec((bt * N, Dn), lambda b: (b, 0)),     # x (flattened)
                pl.BlockSpec((bt, 2 * do_pad), lambda b: (b, 0)),  # [gamma|beta']
                pl.BlockSpec((Dn, do_pad), lambda b: (0, 0)),      # w_node (resident)
            ],
            out_specs=pl.BlockSpec((bt, do_pad), lambda b: (b, 0)),
        ),
        compiler_params=pltpu.CompilerParams(
            dimension_semantics=("parallel",),
            vmem_limit_bytes=vmem_limit_bytes),
    )(x2, gb, w_node)

    return out[:, :Do]


def init_params(key, node_dim, cond_dim, out_dim):
    """Deterministic PyTorch-nn.Linear-style init (uniform +-1/sqrt(fan_in))."""
    ks = jax.random.split(key, 6)

    def lin(kw, kb, fan_in, fan_out):
        bound = 1.0 / jnp.sqrt(jnp.asarray(fan_in, jnp.float32))
        w = jax.random.uniform(kw, (fan_in, fan_out), jnp.float32, -bound, bound)
        b = jax.random.uniform(kb, (1, fan_out), jnp.float32, -bound, bound)
        return w, b

    w_node, b_node = lin(ks[0], ks[1], node_dim, out_dim)
    w_gamma, b_gamma = lin(ks[2], ks[3], cond_dim, out_dim)
    w_beta, b_beta = lin(ks[4], ks[5], cond_dim, out_dim)
    return dict(w_node=w_node, b_node=b_node,
                w_gamma=w_gamma, b_gamma=b_gamma,
                w_beta=w_beta, b_beta=b_beta)


def _reference(x, cond, p, agg_method="mean"):
    h = jnp.einsum("bnd,do->bno", x.astype(jnp.float32), p["w_node"]) + p["b_node"][None]
    gamma = cond @ p["w_gamma"] + p["b_gamma"]
    beta = cond @ p["w_beta"] + p["b_beta"]
    h = jnp.maximum(gamma[:, None, :] * h + beta[:, None, :], 0.0)
    if agg_method == "mean":
        return jnp.mean(h, axis=1)
    if agg_method == "sum":
        return jnp.sum(h, axis=1)
    return jnp.max(h, axis=1)


if __name__ == "__main__":
    B, N = 16, 16          # batch, graph nodes (N % 8 == 0 -> free regroup)
    node_dim, cond_dim, out_dim = 32, 16, 32

    key = jax.random.PRNGKey(0)
    kx, kc, kp = jax.random.split(key, 3)

    x = jax.random.normal(kx, (B, N, node_dim), jnp.float32)
    cond = jax.random.normal(kc, (B, cond_dim), jnp.float32)
    params = init_params(kp, node_dim, cond_dim, out_dim)

    ref = _reference(x, cond, params, "mean")

    # f32 path (works on all generations).
    out = jax.block_until_ready(
        cls_graph_layer(x, cond, params, method="film_mean"))
    assert out.shape == (B, out_dim)
    assert jnp.allclose(out, ref, atol=1e-5, rtol=1e-5), "mismatch vs reference (f32)"

    # bf16 path: x arrives bf16 from the producer (no wrapper-side cast); the
    # node matmul runs bf16 on the MXU with f32 accumulation, FiLM/aggregation f32.
    x_bf16 = x.astype(jnp.bfloat16)   # stands in for an upstream bf16 producer
    out_bf16 = jax.block_until_ready(
        cls_graph_layer(x_bf16, cond, params, method="film_mean"))
    assert jnp.allclose(out_bf16, ref, atol=5e-2, rtol=5e-2), "mismatch vs reference (bf16)"

    print("KERNEL_OK")
</pallas_src>

<mosaic_0001>
module attributes {stable_mosaic.version = 11 : i64} {
  func.func @_cls_film_kernel(%arg0: i32, %arg1: memref<256x32xf32, #tpu.memory_space<vmem>>, %arg2: memref<16x256xf32, #tpu.memory_space<vmem>>, %arg3: memref<32x128xf32, #tpu.memory_space<vmem>>, %arg4: memref<16x128xf32, #tpu.memory_space<vmem>>) attributes {dimension_semantics = [#tpu.dimension_semantics<parallel>], iteration_bounds = array<i64: 1>, scalar_prefetch = 0 : i64, scratch_operands = 0 : i64, tpu.core_type = #tpu.core_type<tc>, window_params = [{transform_indices = @transform_0, window_bounds = array<i64: 256, 32>}, {transform_indices = @transform_1, window_bounds = array<i64: 16, 256>}, {pipeline_mode = #tpu.pipeline_mode<synchronous>, transform_indices = @transform_2, window_bounds = array<i64: 32, 128>}, {transform_indices = @transform_3, window_bounds = array<i64: 16, 128>}]} {
    %c0 = arith.constant 0 : index
    %c0_0 = arith.constant 0 : index
    %0 = vector.load %arg1[%c0, %c0_0] : memref<256x32xf32, #tpu.memory_space<vmem>>, vector<256x32xf32>
    %c0_1 = arith.constant 0 : index
    %c0_2 = arith.constant 0 : index
    %1 = vector.load %arg3[%c0_1, %c0_2] : memref<32x128xf32, #tpu.memory_space<vmem>>, vector<32x128xf32>
    %cst = arith.constant dense<0.000000e+00> : vector<256x128xf32>
    %2 = tpu.matmul %0, %1, %cst {dimension_numbers = #tpu.dot_dimension_numbers<[1], [0], [0], [1], [0, 0, 1, 1], [], []>} : vector<256x32xf32>, vector<32x128xf32>, vector<256x128xf32> -> vector<256x128xf32>
    %3 = vector.shape_cast %2 : vector<256x128xf32> to vector<16x16x128xf32>
    %c0_3 = arith.constant 0 : index
    %c0_4 = arith.constant 0 : index
    %4 = vector.load %arg2[%c0_3, %c0_4] : memref<16x256xf32, #tpu.memory_space<vmem>>, vector<16x128xf32>
    %5 = vector.shape_cast %4 : vector<16x128xf32> to vector<16x1x128xf32>
    %c0_5 = arith.constant 0 : index
    %c128 = arith.constant 128 : index
    %6 = vector.load %arg2[%c0_5, %c128] : memref<16x256xf32, #tpu.memory_space<vmem>>, vector<16x128xf32>
    %7 = vector.shape_cast %6 : vector<16x128xf32> to vector<16x1x128xf32>
    %8 = vector.broadcast %5 : vector<16x1x128xf32> to vector<16x16x128xf32>
    %9 = arith.mulf %8, %3 : vector<16x16x128xf32>
    %10 = vector.broadcast %7 : vector<16x1x128xf32> to vector<16x16x128xf32>
    %11 = arith.addf %9, %10 : vector<16x16x128xf32>
    %cst_6 = arith.constant 0.000000e+00 : f32
    %12 = vector.broadcast %cst_6 : f32 to vector<16x16x128xf32>
    %13 = arith.maximumf %11, %12 : vector<16x16x128xf32>
    %cst_7 = arith.constant dense<0.000000e+00> : vector<16x128xf32>
    %14 = vector.multi_reduction <add>, %13, %cst_7 [1] : vector<16x16x128xf32> to vector<16x128xf32>
    %cst_8 = arith.constant 6.250000e-02 : f32
    %15 = vector.broadcast %cst_8 : f32 to vector<16x128xf32>
    %16 = arith.mulf %14, %15 : vector<16x128xf32>
    %c0_9 = arith.constant 0 : index
    %c0_10 = arith.constant 0 : index
    %17 = vector.load %arg4[%c0_9, %c0_10] : memref<16x128xf32, #tpu.memory_space<vmem>>, vector<16x128xf32>
    tpu.vector_store %arg4[%c0_9, %c0_10], %16 {strides = array<i32>} : memref<16x128xf32, #tpu.memory_space<vmem>>, vector<16x128xf32>,
    return
  }
  func.func @transform_0(%arg0: i32) -> (i32, i32) {
    %c0_i32 = arith.constant 0 : i32
    %c0_i32_0 = arith.constant 0 : i32
    return %arg0, %c0_i32 : i32, i32
  }
  func.func @transform_1(%arg0: i32) -> (i32, i32) {
    %c0_i32 = arith.constant 0 : i32
    %c0_i32_0 = arith.constant 0 : i32
    return %arg0, %c0_i32 : i32, i32
  }
  func.func @transform_2(%arg0: i32) -> (i32, i32) {
    %c0_i32 = arith.constant 0 : i32
    %c0_i32_0 = arith.constant 0 : i32
    %c0_i32_1 = arith.constant 0 : i32
    return %c0_i32, %c0_i32_0 : i32, i32
  }
  func.func @transform_3(%arg0: i32) -> (i32, i32) {
    %c0_i32 = arith.constant 0 : i32
    %c0_i32_0 = arith.constant 0 : i32
    return %arg0, %c0_i32 : i32, i32
  }
}

</mosaic_0001>

<llo_original>
// kernel: tpu_custom_call.1
$region0: #{tpu_custom_call.1}
  #allocation0 [shape = 'u32[]', space=smem, size = 0x4, offset = 0x4, fixed_abs, tag = 'smem constant byte address 0x4 - core index']
  #allocation1 [shape = 'u32[72,128]{1,0:T(1,128)}', space=vmem, size = 0x9000, scoped, tag = 'internal scratch']
  %s0 = inlined_call_operand.vmem [shape: f32[256,32], index: 0, kind: input, shape index: {}]
  %s1 = inlined_call_operand.vmem [shape: f32[16,256], index: 1, kind: input, shape index: {}]
  %s2 = inlined_call_operand.vmem [shape: f32[32,128], index: 2, kind: input, shape index: {}]
  %s3 = inlined_call_operand.hbm [shape: f32[16,128], index: 3, kind: output, shape index: {}]
  %s4 = sld [smem:[#allocation0]]
  $region22: #{tpu_custom_call.1} parent=0
    _
  %s6 = ssub.s32 1, %s4
  %s7 = scalar_select 0, %s6, %s4
  $region1: #{tpu_custom_call.1} parent=0
    #allocation2 [shape = 'u8[8192]{0}', space=vmem, size = 0x2000, scoped, tag = 'output window, operand 0, single buffered']
    #allocation3 [shape = 's32[1]{0}', space=sflag, size = 0x4, scoped, tag = 'scoped memory for tpu_custom_call.1']
    %8 = vsyncpa [#allocation3], 0
    // Predicated region
    $region2: #{tpu_custom_call.1} parent=1 // pred_check
      _
    $region3: #{tpu_custom_call.1} parent=1 // pred_check_branch
      %10 = sbr.rel (0) target = $region5
    $region4: #{tpu_custom_call.1} parent=1 // pred_region
      _
    $region5: #{tpu_custom_call.1} parent=1 // pred_fallthru
      _
    // Predicated region
    $region6: #{tpu_custom_call.1} parent=1 // pred_check
      _
    $region7: #{tpu_custom_call.1} parent=1 // pred_check_branch
      %12 = sbr.rel (0) target = $region9
    $region8: #{tpu_custom_call.1} parent=1 // pred_region
      _
    $region9: #{tpu_custom_call.1} parent=1 // pred_fallthru
      _
    // Predicated region
    $region10: #{tpu_custom_call.1} parent=1 // pred_check
      _
    $region11: #{tpu_custom_call.1} parent=1 // pred_check_branch
      %14 = sbr.rel (0) target = $region13
    $region12: #{tpu_custom_call.1} parent=1 // pred_region
      _
    $region13: #{tpu_custom_call.1} parent=1 // pred_fallthru
      _
    %v15 = vld [vmem:[%s0] sm:$0xff]
    %v16 = vld [vmem:[%s0 + $0x8] sm:$0xff]
    %v17 = vld [vmem:[%s0 + $0x10] sm:$0xff]
    %v18 = vld [vmem:[%s0 + $0x18] sm:$0xff]
    %v19 = vld [vmem:[%s0 + $0x20] sm:$0xff]
    %v20 = vld [vmem:[%s0 + $0x28] sm:$0xff]
    %v21 = vld [vmem:[%s0 + $0x30] sm:$0xff]
    %v22 = vld [vmem:[%s0 + $0x38] sm:$0xff]
    %v23 = vld [vmem:[%s0 + $0x40] sm:$0xff]
    %v24 = vld [vmem:[%s0 + $0x48] sm:$0xff]
    %v25 = vld [vmem:[%s0 + $0x50] sm:$0xff]
    %v26 = vld [vmem:[%s0 + $0x58] sm:$0xff]
    %v27 = vld [vmem:[%s0 + $0x60] sm:$0xff]
    %v28 = vld [vmem:[%s0 + $0x68] sm:$0xff]
    %v29 = vld [vmem:[%s0 + $0x70] sm:$0xff]
    %v30 = vld [vmem:[%s0 + $0x78] sm:$0xff]
    %v31 = vld [vmem:[%s0 + $0x80] sm:$0xff]
    %v32 = vld [vmem:[%s0 + $0x88] sm:$0xff]
    %v33 = vld [vmem:[%s0 + $0x90] sm:$0xff]
    %v34 = vld [vmem:[%s0 + $0x98] sm:$0xff]
    %v35 = vld [vmem:[%s0 + $0xa0] sm:$0xff]
    %v36 = vld [vmem:[%s0 + $0xa8] sm:$0xff]
    %v37 = vld [vmem:[%s0 + $0xb0] sm:$0xff]
    %v38 = vld [vmem:[%s0 + $0xb8] sm:$0xff]
    %v39 = vld [vmem:[%s0 + $0xc0] sm:$0xff]
    %v40 = vld [vmem:[%s0 + $0xc8] sm:$0xff]
    %v41 = vld [vmem:[%s0 + $0xd0] sm:$0xff]
    %v42 = vld [vmem:[%s0 + $0xd8] sm:$0xff]
    %v43 = vld [vmem:[%s0 + $0xe0] sm:$0xff]
    %v44 = vld [vmem:[%s0 + $0xe8] sm:$0xff]
    %v45 = vld [vmem:[%s0 + $0xf0] sm:$0xff]
    %v46 = vld [vmem:[%s0 + $0xf8] sm:$0xff]
    %v47 = vld [vmem:[%s2] sm:$0xff]
    %v48 = vld [vmem:[%s2 + $0x8] sm:$0xff]
    %v49 = vld [vmem:[%s2 + $0x10] sm:$0xff]
    %v50 = vld [vmem:[%s2 + $0x18] sm:$0xff]
    %vm51 = vcmask 261120
    %v53 = vsel %vm51, %v15, 0
    %v56 = vsel %vm51, %v16, 0
    %v59 = vsel %vm51, %v17, 0
    %v62 = vsel %vm51, %v18, 0
    %v65 = vsel %vm51, %v19, 0
    %v68 = vsel %vm51, %v20, 0
    %v71 = vsel %vm51, %v21, 0
    %v74 = vsel %vm51, %v22, 0
    %v77 = vsel %vm51, %v23, 0
    %v80 = vsel %vm51, %v24, 0
    %v83 = vsel %vm51, %v25, 0
    %v86 = vsel %vm51, %v26, 0
    %v89 = vsel %vm51, %v27, 0
    %v92 = vsel %vm51, %v28, 0
    %v95 = vsel %vm51, %v29, 0
    %v98 = vsel %vm51, %v30, 0
    %v101 = vsel %vm51, %v31, 0
    %v104 = vsel %vm51, %v32, 0
    %v107 = vsel %vm51, %v33, 0
    %v110 = vsel %vm51, %v34, 0
    %v113 = vsel %vm51, %v35, 0
    %v116 = vsel %vm51, %v36, 0
    %v119 = vsel %vm51, %v37, 0
    %v122 = vsel %vm51, %v38, 0
    %v125 = vsel %vm51, %v39, 0
    %v128 = vsel %vm51, %v40, 0
    %v131 = vsel %vm51, %v41, 0
    %v134 = vsel %vm51, %v42, 0
    %v137 = vsel %vm51, %v43, 0
    %v140 = vsel %vm51, %v44, 0
    %v143 = vsel %vm51, %v45, 0
    %v146 = vsel %vm51, %v46, 0
    %148 = vmatpush.msra.mxu0 0.0
    %149 = vmatpush.msra.mxu0 0.0
    %150 = vmatpush.msra.mxu0 0.0
    %151 = vmatpush.msra.mxu0 0.0
    %152 = vmatpush.msra.mxu0 0.0
    %153 = vmatpush.msra.mxu0 0.0
    %154 = vmatpush.msra.mxu0 0.0
    %155 = vmatpush.msra.mxu0 0.0
    %156 = vmatpush.msra.mxu0 0.0
    %157 = vmatpush.msra.mxu0 0.0
    %158 = vmatpush.msra.mxu0 0.0
    %159 = vmatpush.msra.mxu0 0.0
    %160 = vmatpush.msra.mxu0 %v50
    %161 = vmatpush.msra.mxu0 %v49
    %162 = vmatpush.msra.mxu0 %v48
    %163 = vmatpush.msra.mxu0 %v47
    %164 = vmatmul.f32.gmra.mxu0 %v53
    %v165 = vpop.f32.mrf.mxu0
    %v166 = vadd.f32 0.0, %v165
    %167 = vmatmul.f32.gmra.mxu0 %v56
    %v168 = vpop.f32.mrf.mxu0
    %v169 = vadd.f32 0.0, %v168
    %170 = vmatmul.f32.gmra.mxu0 %v59
    %v171 = vpop.f32.mrf.mxu0
    %v172 = vadd.f32 0.0, %v171
    %173 = vmatmul.f32.gmra.mxu0 %v62
    %v174 = vpop.f32.mrf.mxu0
    %v175 = vadd.f32 0.0, %v174
    %176 = vmatmul.f32.gmra.mxu0 %v65
    %v177 = vpop.f32.mrf.mxu0
    %v178 = vadd.f32 0.0, %v177
    %179 = vmatmul.f32.gmra.mxu0 %v68
    %v180 = vpop.f32.mrf.mxu0
    %v181 = vadd.f32 0.0, %v180
    %182 = vmatmul.f32.gmra.mxu0 %v71
    %v183 = vpop.f32.mrf.mxu0
    %v184 = vadd.f32 0.0, %v183
    %185 = vmatmul.f32.gmra.mxu0 %v74
    %v186 = vpop.f32.mrf.mxu0
    %v187 = vadd.f32 0.0, %v186
    %188 = vmatmul.f32.gmra.mxu0 %v77
    %v189 = vpop.f32.mrf.mxu0
    %v190 = vadd.f32 0.0, %v189
    %191 = vmatmul.f32.gmra.mxu0 %v80
    %v192 = vpop.f32.mrf.mxu0
    %v193 = vadd.f32 0.0, %v192
    %194 = vmatmul.f32.gmra.mxu0 %v83
    %v195 = vpop.f32.mrf.mxu0
    %v196 = vadd.f32 0.0, %v195
    %197 = vmatmul.f32.gmra.mxu0 %v86
    %v198 = vpop.f32.mrf.mxu0
    %v199 = vadd.f32 0.0, %v198
    %200 = vmatmul.f32.gmra.mxu0 %v89
    %v201 = vpop.f32.mrf.mxu0
    %v202 = vadd.f32 0.0, %v201
    %203 = vmatmul.f32.gmra.mxu0 %v92
    %v204 = vpop.f32.mrf.mxu0
    %v205 = vadd.f32 0.0, %v204
    %206 = vmatmul.f32.gmra.mxu0 %v95
    %v207 = vpop.f32.mrf.mxu0
    %v208 = vadd.f32 0.0, %v207
    %209 = vmatmul.f32.gmra.mxu0 %v98
    %v210 = vpop.f32.mrf.mxu0
    %v211 = vadd.f32 0.0, %v210
    %212 = vmatmul.f32.gmra.mxu0 %v101
    %v213 = vpop.f32.mrf.mxu0
    %v214 = vadd.f32 0.0, %v213
    %215 = vmatmul.f32.gmra.mxu0 %v104
    %v216 = vpop.f32.mrf.mxu0
    %v217 = vadd.f32 0.0, %v216
    %218 = vmatmul.f32.gmra.mxu0 %v107
    %v219 = vpop.f32.mrf.mxu0
    %v220 = vadd.f32 0.0, %v219
    %221 = vmatmul.f32.gmra.mxu0 %v110
    %v222 = vpop.f32.mrf.mxu0
    %v223 = vadd.f32 0.0, %v222
    %224 = vmatmul.f32.gmra.mxu0 %v113
    %v225 = vpop.f32.mrf.mxu0
    %v226 = vadd.f32 0.0, %v225
    %227 = vmatmul.f32.gmra.mxu0 %v116
    %v228 = vpop.f32.mrf.mxu0
    %v229 = vadd.f32 0.0, %v228
    %230 = vmatmul.f32.gmra.mxu0 %v119
    %v231 = vpop.f32.mrf.mxu0
    %v232 = vadd.f32 0.0, %v231
    %233 = vmatmul.f32.gmra.mxu0 %v122
    %v234 = vpop.f32.mrf.mxu0
    %v235 = vadd.f32 0.0, %v234
    %236 = vmatmul.f32.gmra.mxu0 %v125
    %v237 = vpop.f32.mrf.mxu0
    %v238 = vadd.f32 0.0, %v237
    %239 = vmatmul.f32.gmra.mxu0 %v128
    %v240 = vpop.f32.mrf.mxu0
    %v241 = vadd.f32 0.0, %v240
    %242 = vmatmul.f32.gmra.mxu0 %v131
    %v243 = vpop.f32.mrf.mxu0
    %v244 = vadd.f32 0.0, %v243
    %245 = vmatmul.f32.gmra.mxu0 %v134
    %v246 = vpop.f32.mrf.mxu0
    %v247 = vadd.f32 0.0, %v246
    %248 = vmatmul.f32.gmra.mxu0 %v137
    %v249 = vpop.f32.mrf.mxu0
    %v250 = vadd.f32 0.0, %v249
    %251 = vmatmul.f32.gmra.mxu0 %v140
    %v252 = vpop.f32.mrf.mxu0
    %v253 = vadd.f32 0.0, %v252
    %254 = vmatmul.f32.gmra.mxu0 %v143
    %v255 = vpop.f32.mrf.mxu0
    %v256 = vadd.f32 0.0, %v255
    %257 = vmatmul.f32.gmra.mxu0 %v146
    %v258 = vpop.f32.mrf.mxu0
    %v259 = vadd.f32 0.0, %v258
    %260 = vdwg.mxu0
    %v261 = vld [vmem:[%s1] sm:$0xff]
    %v262 = vld [vmem:[%s1 + $0x10] sm:$0xff]
    %v265 = vrot.slane %v261, 1
    %v266 = vrot.slane %v261, 2
    %v267 = vrot.slane %v261, 3
    %v268 = vrot.slane %v261, 4
    %v269 = vrot.slane %v261, 5
    %v270 = vrot.slane %v261, 6
    %v271 = vrot.slane %v261, 7
    %v272 = vrot.slane %v262, 1
    %v273 = vrot.slane %v262, 2
    %v274 = vrot.slane %v262, 3
    %v275 = vrot.slane %v262, 4
    %v276 = vrot.slane %v262, 5
    %v277 = vrot.slane %v262, 6
    %v278 = vrot.slane %v262, 7
    %v279 = vld [vmem:[%s1 + $0x8] sm:$0xff]
    %v280 = vld [vmem:[%s1 + $0x18] sm:$0xff]
    %v283 = vrot.slane %v279, 1
    %v284 = vrot.slane %v279, 2
    %v285 = vrot.slane %v279, 3
    %v286 = vrot.slane %v279, 4
    %v287 = vrot.slane %v279, 5
    %v288 = vrot.slane %v279, 6
    %v289 = vrot.slane %v279, 7
    %v290 = vrot.slane %v280, 1
    %v291 = vrot.slane %v280, 2
    %v292 = vrot.slane %v280, 3
    %v293 = vrot.slane %v280, 4
    %v294 = vrot.slane %v280, 5
    %v295 = vrot.slane %v280, 6
    %v296 = vrot.slane %v280, 7
    %v297 = vperm.slane %v261, 0
    %v298 = vperm.slane %v265, 0
    %v299 = vperm.slane %v266, 0
    %v300 = vperm.slane %v267, 0
    %v301 = vperm.slane %v268, 0
    %v302 = vperm.slane %v269, 0
    %v303 = vperm.slane %v270, 0
    %v304 = vperm.slane %v271, 0
    %v305 = vperm.slane %v262, 0
    %v306 = vperm.slane %v272, 0
    %v307 = vperm.slane %v273, 0
    %v308 = vperm.slane %v274, 0
    %v309 = vperm.slane %v275, 0
    %v310 = vperm.slane %v276, 0
    %v311 = vperm.slane %v277, 0
    %v312 = vperm.slane %v278, 0
    %v329 = vmul.f32 %v297, %v166
    %v330 = vmul.f32 %v297, %v169
    %v331 = vmul.f32 %v298, %v172
    %v332 = vmul.f32 %v298, %v175
    %v333 = vmul.f32 %v299, %v178
    %v334 = vmul.f32 %v299, %v181
    %v335 = vmul.f32 %v300, %v184
    %v336 = vmul.f32 %v300, %v187
    %v337 = vmul.f32 %v301, %v190
    %v338 = vmul.f32 %v301, %v193
    %v339 = vmul.f32 %v302, %v196
    %v340 = vmul.f32 %v302, %v199
    %v341 = vmul.f32 %v303, %v202
    %v342 = vmul.f32 %v303, %v205
    %v343 = vmul.f32 %v304, %v208
    %v344 = vmul.f32 %v304, %v211
    %v345 = vmul.f32 %v305, %v214
    %v346 = vmul.f32 %v305, %v217
    %v347 = vmul.f32 %v306, %v220
    %v348 = vmul.f32 %v306, %v223
    %v349 = vmul.f32 %v307, %v226
    %v350 = vmul.f32 %v307, %v229
    %v351 = vmul.f32 %v308, %v232
    %v352 = vmul.f32 %v308, %v235
    %v353 = vmul.f32 %v309, %v238
    %v354 = vmul.f32 %v309, %v241
    %v355 = vmul.f32 %v310, %v244
    %v356 = vmul.f32 %v310, %v247
    %v357 = vmul.f32 %v311, %v250
    %v358 = vmul.f32 %v311, %v253
    %v359 = vmul.f32 %v312, %v256
    %v360 = vmul.f32 %v312, %v259
    %v361 = vperm.slane %v279, 0
    %v362 = vperm.slane %v283, 0
    %v363 = vperm.slane %v284, 0
    %v364 = vperm.slane %v285, 0
    %v365 = vperm.slane %v286, 0
    %v366 = vperm.slane %v287, 0
    %v367 = vperm.slane %v288, 0
    %v368 = vperm.slane %v289, 0
    %v369 = vperm.slane %v280, 0
    %v370 = vperm.slane %v290, 0
    %v371 = vperm.slane %v291, 0
    %v372 = vperm.slane %v292, 0
    %v373 = vperm.slane %v293, 0
    %v374 = vperm.slane %v294, 0
    %v375 = vperm.slane %v295, 0
    %v376 = vperm.slane %v296, 0
    %v393 = vadd.f32 %v329, %v361
    %v394 = vadd.f32 %v330, %v361
    %v395 = vadd.f32 %v331, %v362
    %v396 = vadd.f32 %v332, %v362
    %v397 = vadd.f32 %v333, %v363
    %v398 = vadd.f32 %v334, %v363
    %v399 = vadd.f32 %v335, %v364
    %v400 = vadd.f32 %v336, %v364
    %v401 = vadd.f32 %v337, %v365
    %v402 = vadd.f32 %v338, %v365
    %v403 = vadd.f32 %v339, %v366
    %v404 = vadd.f32 %v340, %v366
    %v405 = vadd.f32 %v341, %v367
    %v406 = vadd.f32 %v342, %v367
    %v407 = vadd.f32 %v343, %v368
    %v408 = vadd.f32 %v344, %v368
    %v409 = vadd.f32 %v345, %v369
    %v410 = vadd.f32 %v346, %v369
    %v411 = vadd.f32 %v347, %v370
    %v412 = vadd.f32 %v348, %v370
    %v413 = vadd.f32 %v349, %v371
    %v414 = vadd.f32 %v350, %v371
    %v415 = vadd.f32 %v351, %v372
    %v416 = vadd.f32 %v352, %v372
    %v417 = vadd.f32 %v353, %v373
    %v418 = vadd.f32 %v354, %v373
    %v419 = vadd.f32 %v355, %v374
    %v420 = vadd.f32 %v356, %v374
    %v421 = vadd.f32 %v357, %v375
    %v422 = vadd.f32 %v358, %v375
    %v423 = vadd.f32 %v359, %v376
    %v424 = vadd.f32 %v360, %v376
    %v425 = vmax.f32 %v393, 0.0
    %v426 = vmax.f32 %v394, 0.0
    %v427 = vmax.f32 %v395, 0.0
    %v428 = vmax.f32 %v396, 0.0
    %v429 = vmax.f32 %v397, 0.0
    %v430 = vmax.f32 %v398, 0.0
    %v431 = vmax.f32 %v399, 0.0
    %v432 = vmax.f32 %v400, 0.0
    %v433 = vmax.f32 %v401, 0.0
    %v434 = vmax.f32 %v402, 0.0
    %v435 = vmax.f32 %v403, 0.0
    %v436 = vmax.f32 %v404, 0.0
    %v437 = vmax.f32 %v405, 0.0
    %v438 = vmax.f32 %v406, 0.0
    %v439 = vmax.f32 %v407, 0.0
    %v440 = vmax.f32 %v408, 0.0
    %v441 = vmax.f32 %v409, 0.0
    %v442 = vmax.f32 %v410, 0.0
    %v443 = vmax.f32 %v411, 0.0
    %v444 = vmax.f32 %v412, 0.0
    %v445 = vmax.f32 %v413, 0.0
    %v446 = vmax.f32 %v414, 0.0
    %v447 = vmax.f32 %v415, 0.0
    %v448 = vmax.f32 %v416, 0.0
    %v449 = vmax.f32 %v417, 0.0
    %v450 = vmax.f32 %v418, 0.0
    %v451 = vmax.f32 %v419, 0.0
    %v452 = vmax.f32 %v420, 0.0
    %v453 = vmax.f32 %v421, 0.0
    %v454 = vmax.f32 %v422, 0.0
    %v455 = vmax.f32 %v423, 0.0
    %v456 = vmax.f32 %v424, 0.0
    %v457 = vadd.f32 %v425, %v426
    %v458 = vrot.slane %v457, 4
    %v459 = vadd.f32 %v457, %v458
    %v460 = vrot.slane %v459, 2
    %v461 = vadd.f32 %v459, %v460
    %v462 = vrot.slane %v461, 1
    %v463 = vadd.f32 %v461, %v462
    %v464 = vadd.f32 %v427, %v428
    %v465 = vrot.slane %v464, 4
    %v466 = vadd.f32 %v464, %v465
    %v467 = vrot.slane %v466, 2
    %v468 = vadd.f32 %v466, %v467
    %v469 = vrot.slane %v468, 1
    %v470 = vadd.f32 %v468, %v469
    %v471 = vadd.f32 %v429, %v430
    %v472 = vrot.slane %v471, 4
    %v473 = vadd.f32 %v471, %v472
    %v474 = vrot.slane %v473, 2
    %v475 = vadd.f32 %v473, %v474
    %v476 = vrot.slane %v475, 1
    %v477 = vadd.f32 %v475, %v476
    %v478 = vadd.f32 %v431, %v432
    %v479 = vrot.slane %v478, 4
    %v480 = vadd.f32 %v478, %v479
    %v481 = vrot.slane %v480, 2
    %v482 = vadd.f32 %v480, %v481
    %v483 = vrot.slane %v482, 1
    %v484 = vadd.f32 %v482, %v483
    %v485 = vadd.f32 %v433, %v434
    %v486 = vrot.slane %v485, 4
    %v487 = vadd.f32 %v485, %v486
    %v488 = vrot.slane %v487, 2
    %v489 = vadd.f32 %v487, %v488
    %v490 = vrot.slane %v489, 1
    %v491 = vadd.f32 %v489, %v490
    %v492 = vadd.f32 %v435, %v436
    %v493 = vrot.slane %v492, 4
    %v494 = vadd.f32 %v492, %v493
    %v495 = vrot.slane %v494, 2
    %v496 = vadd.f32 %v494, %v495
    %v497 = vrot.slane %v496, 1
    %v498 = vadd.f32 %v496, %v497
    %v499 = vadd.f32 %v437, %v438
    %v500 = vrot.slane %v499, 4
    %v501 = vadd.f32 %v499, %v500
    %v502 = vrot.slane %v501, 2
    %v503 = vadd.f32 %v501, %v502
    %v504 = vrot.slane %v503, 1
    %v505 = vadd.f32 %v503, %v504
    %v506 = vadd.f32 %v439, %v440
    %v507 = vrot.slane %v506, 4
    %v508 = vadd.f32 %v506, %v507
    %v509 = vrot.slane %v508, 2
    %v510 = vadd.f32 %v508, %v509
    %v511 = vrot.slane %v510, 1
    %v512 = vadd.f32 %v510, %v511
    %v513 = vadd.f32 %v441, %v442
    %v514 = vrot.slane %v513, 4
    %v515 = vadd.f32 %v513, %v514
    %v516 = vrot.slane %v515, 2
    %v517 = vadd.f32 %v515, %v516
    %v518 = vrot.slane %v517, 1
    %v519 = vadd.f32 %v517, %v518
    %v520 = vadd.f32 %v443, %v444
    %v521 = vrot.slane %v520, 4
    %v522 = vadd.f32 %v520, %v521
    %v523 = vrot.slane %v522, 2
    %v524 = vadd.f32 %v522, %v523
    %v525 = vrot.slane %v524, 1
    %v526 = vadd.f32 %v524, %v525
    %v527 = vadd.f32 %v445, %v446
    %v528 = vrot.slane %v527, 4
    %v529 = vadd.f32 %v527, %v528
    %v530 = vrot.slane %v529, 2
    %v531 = vadd.f32 %v529, %v530
    %v532 = vrot.slane %v531, 1
    %v533 = vadd.f32 %v531, %v532
    %v534 = vadd.f32 %v447, %v448
    %v535 = vrot.slane %v534, 4
    %v536 = vadd.f32 %v534, %v535
    %v537 = vrot.slane %v536, 2
    %v538 = vadd.f32 %v536, %v537
    %v539 = vrot.slane %v538, 1
    %v540 = vadd.f32 %v538, %v539
    %v541 = vadd.f32 %v449, %v450
    %v542 = vrot.slane %v541, 4
    %v543 = vadd.f32 %v541, %v542
    %v544 = vrot.slane %v543, 2
    %v545 = vadd.f32 %v543, %v544
    %v546 = vrot.slane %v545, 1
    %v547 = vadd.f32 %v545, %v546
    %v548 = vadd.f32 %v451, %v452
    %v549 = vrot.slane %v548, 4
    %v550 = vadd.f32 %v548, %v549
    %v551 = vrot.slane %v550, 2
    %v552 = vadd.f32 %v550, %v551
    %v553 = vrot.slane %v552, 1
    %v554 = vadd.f32 %v552, %v553
    %v555 = vadd.f32 %v453, %v454
    %v556 = vrot.slane %v555, 4
    %v557 = vadd.f32 %v555, %v556
    %v558 = vrot.slane %v557, 2
    %v559 = vadd.f32 %v557, %v558
    %v560 = vrot.slane %v559, 1
    %v561 = vadd.f32 %v559, %v560
    %v562 = vadd.f32 %v455, %v456
    %v563 = vrot.slane %v562, 4
    %v564 = vadd.f32 %v562, %v563
    %v565 = vrot.slane %v564, 2
    %v566 = vadd.f32 %v564, %v565
    %v567 = vrot.slane %v566, 1
    %v568 = vadd.f32 %v566, %v567
    %v569 = vmul.f32 %v463, 0.0625
    %v570 = vmul.f32 %v470, 0.0625
    %v571 = vmul.f32 %v477, 0.0625
    %v572 = vmul.f32 %v484, 0.0625
    %v573 = vmul.f32 %v491, 0.0625
    %v574 = vmul.f32 %v498, 0.0625
    %v575 = vmul.f32 %v505, 0.0625
    %v576 = vmul.f32 %v512, 0.0625
    %v577 = vmul.f32 %v519, 0.0625
    %v578 = vmul.f32 %v526, 0.0625
    %v579 = vmul.f32 %v533, 0.0625
    %v580 = vmul.f32 %v540, 0.0625
    %v581 = vmul.f32 %v547, 0.0625
    %v582 = vmul.f32 %v554, 0.0625
    %v583 = vmul.f32 %v561, 0.0625
    %v584 = vmul.f32 %v568, 0.0625
    %vm601 = vcmask 1041409
    %v602 = vsel %vm601, %v570, %v569
    %vm603 = vcmask 1042434
    %v604 = vsel %vm603, %v571, %v602
    %vm605 = vcmask 1043459
    %v606 = vsel %vm605, %v572, %v604
    %vm607 = vcmask 1044484
    %v608 = vsel %vm607, %v573, %v606
    %vm609 = vcmask 1045509
    %v610 = vsel %vm609, %v574, %v608
    %vm611 = vcmask 1046534
    %v612 = vsel %vm611, %v575, %v610
    %vm613 = vcmask 1047559
    %v614 = vsel %vm613, %v576, %v612
    %v615 = vsel %vm601, %v578, %v577
    %v616 = vsel %vm603, %v579, %v615
    %v617 = vsel %vm605, %v580, %v616
    %v618 = vsel %vm607, %v581, %v617
    %v619 = vsel %vm609, %v582, %v618
    %v620 = vsel %vm611, %v583, %v619
    %v621 = vsel %vm613, %v584, %v620
    %624 = vst [vmem:[#allocation2] sm:$0xff] %v614
    %625 = vst [vmem:[#allocation2 + $0x8] sm:$0xff] %v621
    // Predicated region
    $region14: #{tpu_custom_call.1} parent=1 // pred_check
      _
    $region15: #{tpu_custom_call.1} parent=1 // pred_check_branch
      %627 = sbr.rel (0) target = $region17
    $region16: #{tpu_custom_call.1} parent=1 // pred_region
      %629 = vsyncadd [#allocation3], 0
      %s630 = sshll.u32 [#allocation2], 4
      %s631 = int_to_ptr.vmem [resolvable:$true] %s630
      %s632 = sshll.u32 %s3, 4
      %s633 = int_to_ptr.hbm [resolvable:$true] %s632
      %638 = dma.vmem_to_hbm [thread:$0]  %s631, 256, %s633, [#allocation3], 128, 128, 8
    $region17: #{tpu_custom_call.1} parent=1 // pred_fallthru
      _
    // Predicated region
    $region18: #{tpu_custom_call.1} parent=1 // pred_check
      _
    $region19: #{tpu_custom_call.1} parent=1 // pred_check_branch
      %640 = sbr.rel (0) target = $region21
    $region20: #{tpu_custom_call.1} parent=1 // pred_region
      %642 = dma.done [#allocation3], 256
    $region21: #{tpu_custom_call.1} parent=1 // pred_fallthru
      _
    %643 = vsyncpa [#allocation3], 1

</llo_original>
